<compile_context>
chip_gen: v7x
topology: tpu7x:2x2x1
jax: 0.10.0
libtpu: 0.0.40
codegen_flags: <defaults>
</compile_context>

<pallas_src>
import functools
import math

import jax
import jax.numpy as jnp
from jax import lax
from jax.experimental import pallas as pl
from jax.experimental.pallas import tpu as pltpu


_SQRT2 = math.sqrt(2.0)
_LANE = 128
# Below this per-batch slab size a single-step fused launch beats paying two
# kernel dispatches (relevant only for N == 1).
_SINGLE_STEP_FUSED_BYTES = 2 * 1024 * 1024


def _cdiv(a, b):
    return -(-a // b)


def _round_up(a, b):
    return _cdiv(a, b) * b


def _tpu_budgets():
    """(physical VMEM bytes, #TensorCores) with conservative fallbacks."""
    vmem_cap = 64 * 1024 * 1024          # v7x-sized default: safe everywhere
    n_cores = None
    try:
        info = pltpu.get_tpu_info()
        for name in ("vmem_capacity_bytes", "vmem_bytes", "vmem_size_bytes"):
            v = getattr(info, name, None)
            if isinstance(v, int) and v > 0:
                vmem_cap = v
                break
        for name in ("num_cores", "core_count", "num_tensorcores",
                     "tensorcore_count", "num_tensor_cores"):
            v = getattr(info, name, None)
            if isinstance(v, int) and v > 0:
                n_cores = v
                break
    except Exception:
        pass
    if n_cores is None:
        # Heuristic: 64 MiB-per-TC parts (v7x) are the megacore parts.
        n_cores = 2 if vmem_cap <= 64 * 1024 * 1024 else 1
    return vmem_cap, n_cores


def _gelu_exact(x):
    # nn.GELU() default ("none" approximation) -> exact erf formulation.
    return 0.5 * x * (1.0 + lax.erf(x / jnp.float32(_SQRT2)))


def _se_path(pooled_f32, w1t_ref, b1_ref, w2t_ref, b2_ref):
    """Squeeze-excite MLP on pooled channels. pooled_f32: (Nb, C) f32 -> (Nb, C) f32."""
    h = jnp.dot(pooled_f32, w1t_ref[...],
                preferred_element_type=jnp.float32) + b1_ref[...]   # (Nb, C_red)
    h = _gelu_exact(h)
    att = jnp.dot(h, w2t_ref[...],
                  preferred_element_type=jnp.float32) + b2_ref[...]  # (Nb, C)
    return jax.nn.sigmoid(att)


# ---------------------------------------------------------------------------
# Fused single-pass kernel: whole (Nb, C, HW) slab is VMEM-resident.
# Ragged last batch block is safe: each row's output depends only on that row,
# so OOB (garbage) rows produce garbage that the masked write-back drops.
# ---------------------------------------------------------------------------
def _fused_kernel(x_ref, w1t_ref, b1_ref, w2t_ref, b2_ref, o_ref, *, inv_hw):
    pooled = jnp.sum(x_ref[...], axis=-1, dtype=jnp.float32) * inv_hw   # (Nb, C)
    att = _se_path(pooled, w1t_ref, b1_ref, w2t_ref, b2_ref)            # (Nb, C)
    o_ref[...] = x_ref[...] * att.astype(o_ref.dtype)[:, :, None]


# ---------------------------------------------------------------------------
# Two-pass path (per-batch slab too big for VMEM, or degenerate N == 1).
# Pass 1: HW-tiled channel-sum accumulation + SE path on the last HW tile.
# HW is zero-padded in the wrapper, so every tile is full -> sums are exact.
# ---------------------------------------------------------------------------
def _pool_se_kernel(x_ref, w1t_ref, b1_ref, w2t_ref, b2_ref, att_ref, acc_ref,
                    *, inv_hw):
    j = pl.program_id(1)

    @pl.when(j == 0)
    def _():
        acc_ref[...] = jnp.zeros_like(acc_ref)

    acc_ref[...] += jnp.sum(x_ref[...], axis=-1, dtype=jnp.float32)     # (1, C)

    @pl.when(j == pl.num_programs(1) - 1)
    def _():
        att = _se_path(acc_ref[...] * inv_hw,
                       w1t_ref, b1_ref, w2t_ref, b2_ref)                # (1, C)
        att_ref[...] = att[:, :, None]                                  # (1, C, 1)


# Pass 2: lane-dense elementwise scale (HW tile is a multiple of 128).
def _scale_kernel(x_ref, att_ref, o_ref):
    o_ref[...] = x_ref[...] * att_ref[...].astype(o_ref.dtype)  # (1,C,t)*(1,C,1)


# ---------------------------------------------------------------------------
# Tiling heuristics.
# ---------------------------------------------------------------------------
def _pick_batch_tile(n, nb_cap, n_cores):
    """Batch tile for the fused path (cdiv grid; last block may be ragged)."""
    nb = max(1, min(n, int(nb_cap)))
    if n >= 2:
        # Ensure >= 2 pipelined grid steps -> DMA/compute overlap on every
        # generation (this only shrinks nb when VMEM would have allowed 1 step).
        nb = min(nb, _cdiv(n, 2))
    if n_cores > 1 and nb < n:
        # Megacore: prefer a step count that is a multiple of the TC count.
        steps = _cdiv(n, nb)
        if steps % n_cores:
            target = _round_up(steps, n_cores)
            nb = max(1, _cdiv(n, target))
    return nb


def _pick_hw_tiles(hw, c, itemsize, budget, vmem_limit, force_multi_step):
    """(pass-1 tile, pass-2 tile, padded HW). Both tiles are multiples of 128,
    pass-1 tile is an integer multiple of pass-2's, and padded HW is a multiple
    of both (so no ragged HW blocks ever feed the pooling accumulator)."""
    hw128 = _round_up(hw, _LANE)

    def floor_lane(v):
        return (v // _LANE) * _LANE

    # Pass 2 (elementwise scale): double-buffered input + double-buffered output.
    cap2 = floor_lane(budget // (4 * c * itemsize))
    if cap2 < _LANE:
        if 4 * c * _LANE * itemsize <= vmem_limit:
            cap2 = _LANE   # honour the 128-lane minimum; still fits real VMEM
        else:
            # TODO(synk): split the channel axis when C is so large that even a
            # single 128-lane block exceeds VMEM.
            raise ValueError(
                "channel_attention: C too large for a 128-lane VMEM block")
    # Pass 1 (streaming pooled read): only the input block is double-buffered.
    cap1 = budget // (2 * c * itemsize)

    if force_multi_step and hw128 >= 2 * _LANE:
        # N == 1 route: make sure each pass still gets >= 2 grid steps.
        half = max(_LANE, floor_lane(hw128 // 2))
        cap2 = min(cap2, half)
        cap1 = min(cap1, half)

    thw2 = max(_LANE, min(cap2, hw128))
    k = max(1, min(cap1, hw128) // thw2)
    thw1 = thw2 * k
    hw_p = _round_up(hw, thw1)
    return thw1, thw2, hw_p


# ---------------------------------------------------------------------------
# Wrapper.
# ---------------------------------------------------------------------------
def channel_attention(x_nchw, w1, b1, w2, b2, *,
                      vmem_limit_bytes=None,
                      block_budget_bytes=None):
    """x: (N,C,H,W); w1: (C_red,C); b1: (1,C_red); w2: (C,C_red); b2: (1,C)."""
    n, c, h, w = x_nchw.shape
    hw = h * w
    c_red = w1.shape[0]
    x_flat = x_nchw.reshape(n, c, hw)

    # Pre-transpose the 1x1-conv weights once (wrapper-side, free) so the
    # kernels contract along the lane axis without an in-kernel `.T`.
    w1t = jnp.transpose(w1)   # (C, C_red)
    w2t = jnp.transpose(w2)   # (C_red, C)

    itemsize = jnp.dtype(x_nchw.dtype).itemsize
    vmem_cap, n_cores = _tpu_budgets()
    if vmem_limit_bytes is None:
        # ~84% of physical VMEM: ≈108 MiB on 128 MiB parts (v5e/v6e),
        # ≈54 MiB on 64 MiB parts (v7x).
        vmem_limit_bytes = int((vmem_cap * 27) // 32)
    if block_budget_bytes is None:
        block_budget_bytes = (3 * vmem_limit_bytes) // 4      # ~75% of the limit

    param_bytes = 4 * (w1t.size + w2t.size + b1.size + b2.size)
    mlp_flops = 4 * n * c * c_red
    mlp_trans = 2 * n * (c + c_red)

    slab_bytes = c * hw * itemsize                            # one batch slab
    # Double-buffered input block + double-buffered output block = 4 slabs * Nb.
    nb_cap = block_budget_bytes // (4 * slab_bytes)

    # Fused 2x-traffic path when a full batch slab fits the budget, except the
    # degenerate 1-step case (N == 1 with a big slab): that one goes two-pass
    # so it still gets pipelined DMA/compute overlap.
    use_fused = nb_cap >= 1 and (n >= 2 or slab_bytes <= _SINGLE_STEP_FUSED_BYTES)

    if use_fused:
        nb = _pick_batch_tile(n, nb_cap, n_cores)
        grid_n = _cdiv(n, nb)     # ragged last block: reads padded, writes masked
        kernel = functools.partial(_fused_kernel, inv_hw=1.0 / hw)
        ce = pl.CostEstimate(flops=3 * n * c * hw + mlp_flops,
                             transcendentals=mlp_trans,
                             bytes_accessed=2 * n * c * hw * itemsize + param_bytes)
        out_flat = pl.pallas_call(
            kernel,
            out_shape=jax.ShapeDtypeStruct((n, c, hw), x_nchw.dtype),
            grid_spec=pltpu.PrefetchScalarGridSpec(
                num_scalar_prefetch=0,
                grid=(grid_n,),
                in_specs=[
                    pl.BlockSpec((nb, c, hw), lambda i: (i, 0, 0)),
                    pl.BlockSpec((c, c_red), lambda i: (0, 0)),
                    pl.BlockSpec((1, c_red), lambda i: (0, 0)),
                    pl.BlockSpec((c_red, c), lambda i: (0, 0)),
                    pl.BlockSpec((1, c), lambda i: (0, 0)),
                ],
                out_specs=pl.BlockSpec((nb, c, hw), lambda i: (i, 0, 0)),
            ),
            compiler_params=pltpu.CompilerParams(
                dimension_semantics=("parallel",),
                vmem_limit_bytes=vmem_limit_bytes),
            cost_estimate=ce,
        )(x_flat, w1t, b1, w2t, b2)
        return out_flat.reshape(n, c, h, w)

    # --- two-pass path: per-batch slab does not fit VMEM (or N == 1, big) ---
    thw1, thw2, hw_p = _pick_hw_tiles(hw, c, itemsize, block_budget_bytes,
                                      vmem_limit_bytes,
                                      force_multi_step=(n == 1))
    # Zero-pad the flattened HW axis so every block is full and lane-dense;
    # zeros do not perturb the channel sums (we divide by the true hw).
    x_p = x_flat if hw_p == hw else jnp.pad(
        x_flat, ((0, 0), (0, 0), (0, hw_p - hw)))
    n_hw1 = hw_p // thw1
    n_hw2 = hw_p // thw2

    p1 = functools.partial(_pool_se_kernel, inv_hw=1.0 / hw)
    ce1 = pl.CostEstimate(flops=n * c * hw_p + mlp_flops,
                          transcendentals=mlp_trans,
                          bytes_accessed=n * c * hw_p * itemsize + param_bytes + 4 * n * c)
    att = pl.pallas_call(
        p1,
        out_shape=jax.ShapeDtypeStruct((n, c, 1), jnp.float32),
        grid_spec=pltpu.PrefetchScalarGridSpec(
            num_scalar_prefetch=0,
            grid=(n, n_hw1),
            in_specs=[
                pl.BlockSpec((1, c, thw1), lambda b, j: (b, 0, j)),
                pl.BlockSpec((c, c_red), lambda b, j: (0, 0)),
                pl.BlockSpec((1, c_red), lambda b, j: (0, 0)),
                pl.BlockSpec((c_red, c), lambda b, j: (0, 0)),
                pl.BlockSpec((1, c), lambda b, j: (0, 0)),
            ],
            out_specs=pl.BlockSpec((1, c, 1), lambda b, j: (b, 0, 0)),
            scratch_shapes=[pltpu.VMEM((1, c), jnp.float32)],
        ),
        compiler_params=pltpu.CompilerParams(
            dimension_semantics=("parallel", "arbitrary"),
            vmem_limit_bytes=vmem_limit_bytes),
        cost_estimate=ce1,
    )(x_p, w1t, b1, w2t, b2)

    ce2 = pl.CostEstimate(flops=n * c * hw_p, transcendentals=0,
                          bytes_accessed=2 * n * c * hw_p * itemsize + 4 * n * c)
    out_p = pl.pallas_call(
        _scale_kernel,
        out_shape=jax.ShapeDtypeStruct((n, c, hw_p), x_nchw.dtype),
        grid_spec=pltpu.PrefetchScalarGridSpec(
            num_scalar_prefetch=0,
            grid=(n, n_hw2),
            in_specs=[
                pl.BlockSpec((1, c, thw2), lambda b, j: (b, 0, j)),
                pl.BlockSpec((1, c, 1), lambda b, j: (b, 0, 0)),
            ],
            out_specs=pl.BlockSpec((1, c, thw2), lambda b, j: (b, 0, j)),
        ),
        compiler_params=pltpu.CompilerParams(
            dimension_semantics=("parallel", "parallel"),
            vmem_limit_bytes=vmem_limit_bytes),
        cost_estimate=ce2,
    )(x_p, att)
    out_flat = out_p if hw_p == hw else out_p[:, :, :hw]
    return out_flat.reshape(n, c, h, w)


# ---------------------------------------------------------------------------
# Reference & test.
# ---------------------------------------------------------------------------
def _reference(x, w1, b1, w2, b2):
    pooled = jnp.mean(x.astype(jnp.float32), axis=(2, 3))          # (N, C)
    hmid = _gelu_exact(pooled @ w1.T + b1)                         # (N, C_red)
    att = jax.nn.sigmoid(hmid @ w2.T + b2)                         # (N, C)
    return x * att[:, :, None, None].astype(x.dtype)


if __name__ == "__main__":
    # Small shapes consistent with the module: dim=32, reduction=8 -> hidden 4.
    N, C, H, W = 2, 32, 16, 16
    reduction = 8
    C_red = C // reduction

    key = jax.random.PRNGKey(0)
    kx, k1, k2, k3, k4 = jax.random.split(key, 5)

    x = jax.random.normal(kx, (N, C, H, W), dtype=jnp.float32)

    # Deterministic parameter init (Conv2d-like uniform bounds).
    bound1 = 1.0 / math.sqrt(C)
    w1 = jax.random.uniform(k1, (C_red, C), jnp.float32, -bound1, bound1)
    b1 = jax.random.uniform(k2, (1, C_red), jnp.float32, -bound1, bound1)
    bound2 = 1.0 / math.sqrt(C_red)
    w2 = jax.random.uniform(k3, (C, C_red), jnp.float32, -bound2, bound2)
    b2 = jax.random.uniform(k4, (1, C), jnp.float32, -bound2, bound2)

    ref = _reference(x, w1, b1, w2, b2)

    # 1) Fused single-pass path, generation-aware VMEM sizing.
    out = jax.block_until_ready(channel_attention(x, w1, b1, w2, b2))
    assert out.shape == (N, C, H, W)
    assert jnp.allclose(out, ref, atol=1e-5, rtol=1e-5), "fused path mismatch"

    # 2) Force the two-pass (HW-tiled pooling + lane-dense scale) path.
    out2 = jax.block_until_ready(
        channel_attention(x, w1, b1, w2, b2, block_budget_bytes=64 * 1024))
    assert jnp.allclose(out2, ref, atol=1e-5, rtol=1e-5), "two-pass mismatch"

    # 3) Ragged batch (cdiv tiling, masked last block) on the fused path.
    x3 = jax.random.normal(kx, (3, C, H, W), dtype=jnp.float32)
    ref3 = _reference(x3, w1, b1, w2, b2)
    out3 = jax.block_until_ready(channel_attention(x3, w1, b1, w2, b2))
    assert jnp.allclose(out3, ref3, atol=1e-5, rtol=1e-5), "ragged-N mismatch"

    # 4) Ragged HW (not a multiple of 128): padded two-pass path.
    xr = jax.random.normal(kx, (N, C, 15, 15), dtype=jnp.float32)
    refr = _reference(xr, w1, b1, w2, b2)
    outr = jax.block_until_ready(
        channel_attention(xr, w1, b1, w2, b2, block_budget_bytes=64 * 1024))
    assert jnp.allclose(outr, refr, atol=1e-5, rtol=1e-5), "ragged-HW mismatch"

    print("KERNEL_OK")
</pallas_src>

<mosaic_0001>
module attributes {stable_mosaic.version = 11 : i64} {
  func.func @_fused_kernel(%arg0: i32, %arg1: memref<1x32x256xf32, #tpu.memory_space<vmem>>, %arg2: memref<32x4xf32, #tpu.memory_space<vmem>>, %arg3: memref<1x4xf32, #tpu.memory_space<vmem>>, %arg4: memref<4x32xf32, #tpu.memory_space<vmem>>, %arg5: memref<1x32xf32, #tpu.memory_space<vmem>>, %arg6: memref<1x32x256xf32, #tpu.memory_space<vmem>>) attributes {dimension_semantics = [#tpu.dimension_semantics<parallel>], iteration_bounds = array<i64: 2>, scalar_prefetch = 0 : i64, scratch_operands = 0 : i64, tpu.core_type = #tpu.core_type<tc>, window_params = [{transform_indices = @transform_0, window_bounds = array<i64: 1, 32, 256>}, {pipeline_mode = #tpu.pipeline_mode<synchronous>, transform_indices = @transform_1, window_bounds = array<i64: 32, 4>}, {pipeline_mode = #tpu.pipeline_mode<synchronous>, transform_indices = @transform_2, window_bounds = array<i64: 1, 4>}, {pipeline_mode = #tpu.pipeline_mode<synchronous>, transform_indices = @transform_3, window_bounds = array<i64: 4, 32>}, {pipeline_mode = #tpu.pipeline_mode<synchronous>, transform_indices = @transform_4, window_bounds = array<i64: 1, 32>}, {transform_indices = @transform_5, window_bounds = array<i64: 1, 32, 256>}]} {
    %c0 = arith.constant 0 : index
    %c0_0 = arith.constant 0 : index
    %c0_1 = arith.constant 0 : index
    %0 = vector.load %arg1[%c0, %c0_0, %c0_1] : memref<1x32x256xf32, #tpu.memory_space<vmem>>, vector<1x32x256xf32>
    %cst = arith.constant dense<0.000000e+00> : vector<1x32xf32>
    %1 = vector.multi_reduction <add>, %0, %cst [2] : vector<1x32x256xf32> to vector<1x32xf32>
    %cst_2 = arith.constant 3.906250e-03 : f32
    %2 = vector.broadcast %cst_2 : f32 to vector<1x32xf32>
    %3 = arith.mulf %1, %2 : vector<1x32xf32>
    %c0_3 = arith.constant 0 : index
    %c0_4 = arith.constant 0 : index
    %4 = vector.load %arg2[%c0_3, %c0_4] : memref<32x4xf32, #tpu.memory_space<vmem>>, vector<32x4xf32>
    %cst_5 = arith.constant dense<0.000000e+00> : vector<1x4xf32>
    %5 = tpu.matmul %3, %4, %cst_5 {dimension_numbers = #tpu.dot_dimension_numbers<[1], [0], [0], [1], [0, 0, 1, 1], [], []>} : vector<1x32xf32>, vector<32x4xf32>, vector<1x4xf32> -> vector<1x4xf32>
    %c0_6 = arith.constant 0 : index
    %c0_7 = arith.constant 0 : index
    %6 = vector.load %arg3[%c0_6, %c0_7] : memref<1x4xf32, #tpu.memory_space<vmem>>, vector<1x4xf32>
    %7 = arith.addf %5, %6 : vector<1x4xf32>
    %cst_8 = arith.constant 5.000000e-01 : f32
    %8 = vector.broadcast %cst_8 : f32 to vector<1x4xf32>
    %9 = arith.mulf %8, %7 : vector<1x4xf32>
    %cst_9 = arith.constant 1.41421354 : f32
    %10 = vector.broadcast %cst_9 : f32 to vector<1x4xf32>
    %11 = arith.divf %7, %10 : vector<1x4xf32>
    %12 = math.erf %11 : vector<1x4xf32>
    %cst_10 = arith.constant 1.000000e+00 : f32
    %13 = vector.broadcast %cst_10 : f32 to vector<1x4xf32>
    %14 = arith.addf %13, %12 : vector<1x4xf32>
    %15 = arith.mulf %9, %14 : vector<1x4xf32>
    %c0_11 = arith.constant 0 : index
    %c0_12 = arith.constant 0 : index
    %16 = vector.load %arg4[%c0_11, %c0_12] : memref<4x32xf32, #tpu.memory_space<vmem>>, vector<4x32xf32>
    %cst_13 = arith.constant dense<0.000000e+00> : vector<1x32xf32>
    %17 = tpu.matmul %15, %16, %cst_13 {dimension_numbers = #tpu.dot_dimension_numbers<[1], [0], [0], [1], [0, 0, 1, 1], [], []>} : vector<1x4xf32>, vector<4x32xf32>, vector<1x32xf32> -> vector<1x32xf32>
    %c0_14 = arith.constant 0 : index
    %c0_15 = arith.constant 0 : index
    %18 = vector.load %arg5[%c0_14, %c0_15] : memref<1x32xf32, #tpu.memory_space<vmem>>, vector<1x32xf32>
    %19 = arith.addf %17, %18 : vector<1x32xf32>
    %20 = arith.negf %19 : vector<1x32xf32>
    %21 = math.exp %20 : vector<1x32xf32>
    %cst_16 = arith.constant 1.000000e+00 : f32
    %22 = vector.broadcast %cst_16 : f32 to vector<1x32xf32>
    %23 = arith.addf %22, %21 : vector<1x32xf32>
    %24 = arith.divf %22, %23 : vector<1x32xf32>
    %c0_17 = arith.constant 0 : index
    %c0_18 = arith.constant 0 : index
    %c0_19 = arith.constant 0 : index
    %25 = vector.load %arg1[%c0_17, %c0_18, %c0_19] : memref<1x32x256xf32, #tpu.memory_space<vmem>>, vector<1x32x256xf32>
    %26 = vector.shape_cast %24 : vector<1x32xf32> to vector<1x32x1xf32>
    %27 = vector.broadcast %26 : vector<1x32x1xf32> to vector<1x32x256xf32>
    %28 = arith.mulf %25, %27 : vector<1x32x256xf32>
    %c0_20 = arith.constant 0 : index
    %c0_21 = arith.constant 0 : index
    %c0_22 = arith.constant 0 : index
    %29 = vector.load %arg6[%c0_20, %c0_21, %c0_22] : memref<1x32x256xf32, #tpu.memory_space<vmem>>, vector<1x32x256xf32>
    tpu.vector_store %arg6[%c0_20, %c0_21, %c0_22], %28 {strides = array<i32>} : memref<1x32x256xf32, #tpu.memory_space<vmem>>, vector<1x32x256xf32>,
    return
  }
  func.func @transform_0(%arg0: i32) -> (i32, i32, i32) {
    %c0_i32 = arith.constant 0 : i32
    %c0_i32_0 = arith.constant 0 : i32
    %c0_i32_1 = arith.constant 0 : i32
    return %arg0, %c0_i32, %c0_i32_0 : i32, i32, i32
  }
  func.func @transform_1(%arg0: i32) -> (i32, i32) {
    %c0_i32 = arith.constant 0 : i32
    %c0_i32_0 = arith.constant 0 : i32
    %c0_i32_1 = arith.constant 0 : i32
    return %c0_i32, %c0_i32_0 : i32, i32
  }
  func.func @transform_2(%arg0: i32) -> (i32, i32) {
    %c0_i32 = arith.constant 0 : i32
    %c0_i32_0 = arith.constant 0 : i32
    %c0_i32_1 = arith.constant 0 : i32
    return %c0_i32, %c0_i32_0 : i32, i32
  }
  func.func @transform_3(%arg0: i32) -> (i32, i32) {
    %c0_i32 = arith.constant 0 : i32
    %c0_i32_0 = arith.constant 0 : i32
    %c0_i32_1 = arith.constant 0 : i32
    return %c0_i32, %c0_i32_0 : i32, i32
  }
  func.func @transform_4(%arg0: i32) -> (i32, i32) {
    %c0_i32 = arith.constant 0 : i32
    %c0_i32_0 = arith.constant 0 : i32
    %c0_i32_1 = arith.constant 0 : i32
    return %c0_i32, %c0_i32_0 : i32, i32
  }
  func.func @transform_5(%arg0: i32) -> (i32, i32, i32) {
    %c0_i32 = arith.constant 0 : i32
    %c0_i32_0 = arith.constant 0 : i32
    %c0_i32_1 = arith.constant 0 : i32
    return %arg0, %c0_i32, %c0_i32_0 : i32, i32, i32
  }
}

</mosaic_0001>

<llo_original>
// kernel: tpu_custom_call.1
$region0: #{tpu_custom_call.1}
  #allocation0 [shape = 'u32[]', space=smem, size = 0x4, offset = 0x4, fixed_abs, tag = 'smem constant byte address 0x4 - core index']
  #allocation1 [shape = 'u32[144,128]{1,0:T(1,128)}', space=vmem, size = 0x12000, scoped, tag = 'internal scratch']
  %s0 = inlined_call_operand.hbm [shape: f32[2,32,256], index: 0, kind: input, shape index: {}]
  %s1 = inlined_call_operand.vmem [shape: f32[32,4], index: 1, kind: input, shape index: {}]
  %s2 = inlined_call_operand.vmem [shape: f32[1,4], index: 2, kind: input, shape index: {}]
  %s3 = inlined_call_operand.vmem [shape: f32[4,32], index: 3, kind: input, shape index: {}]
  %s4 = inlined_call_operand.vmem [shape: f32[1,32], index: 4, kind: input, shape index: {}]
  %s5 = inlined_call_operand.hbm [shape: f32[2,32,256], index: 5, kind: output, shape index: {}]
  %s6 = sld [smem:[#allocation0]]
  $region57: #{tpu_custom_call.1} parent=0
    _
  %s8 = ssub.s32 1, %s6
  %s9 = scalar_select 0, %s8, %s6
  $region1: #{tpu_custom_call.1} parent=0
    #allocation2 [shape = 'u8[65536]{0}', space=vmem, size = 0x10000, scoped, tag = 'input window, operand 0']
    #allocation3 [shape = 's32[2]{0}', space=sflag, size = 0x8, scoped, tag = 'scoped memory for tpu_custom_call.1']
    #allocation4 [shape = 's32[2]{0}', space=sflag, size = 0x8, scoped, tag = 'scoped memory for tpu_custom_call.1']
    #allocation5 [shape = 'u8[65536]{0}', space=vmem, size = 0x10000, scoped, tag = 'output window, operand 0']
    %10 = vsyncpa [#allocation3], 0
    %s11 = scalar_lea.sflag [#allocation3], 1
    %12 = vsyncpa %s11, 0
    %13 = vsyncpa [#allocation4], 0
    %s14 = scalar_lea.sflag [#allocation4], 1
    %15 = vsyncpa %s14, 0
    loop: start=0, step=1, limit=4
    $region2: #{tpu_custom_call.1} parent=1 // loop_pre_header
      _
    $region3: #{tpu_custom_call.1} parent=1 // loop_header
      %s17 = sphi 0, %s21
      %p18 = scmp.ge.s32.totalorder %s17, 4
      %s27 = sphi 0, %s29
      %s30 = sphi 0, %s27
      %s31 = sphi 0, %s30
      %s47 = sphi 0, %s31
      %s51 = sphi 0, %s51
      %s53 = sphi 0, %s51
      %s54 = sphi 0, %s53
      %s68 = sphi 0, %s54
      %s72 = sphi 0, %s72
      %s74 = sphi 0, %s72
      %s75 = sphi 0, %s74
      %s89 = sphi 0, %s75
      %s93 = sphi 0, %s93
      %s95 = sphi 0, %s93
      %s96 = sphi 0, %s95
      %s110 = sphi 0, %s96
      %s114 = sphi 0, %s114
      %s116 = sphi 0, %s114
      %s117 = sphi 0, %s116
      %s131 = sphi 0, %s117
      %s137 = sphi 0, %s139
      %s140 = sphi 0, %s137
      %s141 = sphi 0, %s140
      %s157 = sphi 0, %s141
    $region4: #{tpu_custom_call.1} parent=1 // loop_header_branch
      %20 = sbr.rel (%p18) target = $region8
    $region5: #{tpu_custom_call.1} parent=1 // loop_body
      %s22 = ssub.s32 %s17, 1
      %s23 = ssub.s32 %s17, 2
      %s24 = sadd.s32 %s17, 1
      %s25 = ssub.s32 %s17, %s24
      %p26 = scmp.eq.s32.totalorder %s25, 0
      %s28 = sadd.s32 %s27, 1
      %s29 = scalar_select %p26, %s27, %s28
      %p32 = pneg %p26
      %p33 = scmp.eq.s32.totalorder %s17, 1
      %p34 = por %p32, %p33
      %p35 = scmp.ne.s32.totalorder %s27, %s30
      %p36 = scmp.eq.s32.totalorder %s17, 0
      %p37 = por %p35, %p36
      %p38 = scmp.ne.s32.totalorder %s27, %s30
      %p39 = scmp.eq.s32.totalorder %s22, 1
      %p40 = por %p38, %p39
      %p41 = scmp.ne.s32.totalorder %s30, %s31
      %p42 = scmp.eq.s32.totalorder %s22, 0
      %p43 = por %p41, %p42
      %p44 = scmp.ne.s32.totalorder %s30, %s31
      %p45 = scmp.eq.s32.totalorder %s23, 1
      %p46 = por %p44, %p45
      %p48 = scmp.ne.s32.totalorder %s31, %s47
      %p49 = scmp.eq.s32.totalorder %s23, 0
      %p50 = por %p48, %p49
      %s52 = sadd.s32 %s51, 1
      %p55 = scmp.eq.s32.totalorder %s17, 1
      %p56 = scmp.ne.s32.totalorder %s51, %s53
      %p57 = scmp.eq.s32.totalorder %s17, 0
      %p58 = por %p56, %p57
      %p59 = scmp.ne.s32.totalorder %s51, %s53
      %p60 = scmp.eq.s32.totalorder %s22, 1
      %p61 = por %p59, %p60
      %p62 = scmp.ne.s32.totalorder %s53, %s54
      %p63 = scmp.eq.s32.totalorder %s22, 0
      %p64 = por %p62, %p63
      %p65 = scmp.ne.s32.totalorder %s53, %s54
      %p66 = scmp.eq.s32.totalorder %s23, 1
      %p67 = por %p65, %p66
      %p69 = scmp.ne.s32.totalorder %s54, %s68
      %p70 = scmp.eq.s32.totalorder %s23, 0
      %p71 = por %p69, %p70
      %s73 = sadd.s32 %s72, 1
      %p76 = scmp.eq.s32.totalorder %s17, 1
      %p77 = scmp.ne.s32.totalorder %s72, %s74
      %p78 = scmp.eq.s32.totalorder %s17, 0
      %p79 = por %p77, %p78
      %p80 = scmp.ne.s32.totalorder %s72, %s74
      %p81 = scmp.eq.s32.totalorder %s22, 1
      %p82 = por %p80, %p81
      %p83 = scmp.ne.s32.totalorder %s74, %s75
      %p84 = scmp.eq.s32.totalorder %s22, 0
      %p85 = por %p83, %p84
      %p86 = scmp.ne.s32.totalorder %s74, %s75
      %p87 = scmp.eq.s32.totalorder %s23, 1
      %p88 = por %p86, %p87
      %p90 = scmp.ne.s32.totalorder %s75, %s89
      %p91 = scmp.eq.s32.totalorder %s23, 0
      %p92 = por %p90, %p91
      %s94 = sadd.s32 %s93, 1
      %p97 = scmp.eq.s32.totalorder %s17, 1
      %p98 = scmp.ne.s32.totalorder %s93, %s95
      %p99 = scmp.eq.s32.totalorder %s17, 0
      %p100 = por %p98, %p99
      %p101 = scmp.ne.s32.totalorder %s93, %s95
      %p102 = scmp.eq.s32.totalorder %s22, 1
      %p103 = por %p101, %p102
      %p104 = scmp.ne.s32.totalorder %s95, %s96
      %p105 = scmp.eq.s32.totalorder %s22, 0
      %p106 = por %p104, %p105
      %p107 = scmp.ne.s32.totalorder %s95, %s96
      %p108 = scmp.eq.s32.totalorder %s23, 1
      %p109 = por %p107, %p108
      %p111 = scmp.ne.s32.totalorder %s96, %s110
      %p112 = scmp.eq.s32.totalorder %s23, 0
      %p113 = por %p111, %p112
      %s115 = sadd.s32 %s114, 1
      %p118 = scmp.eq.s32.totalorder %s17, 1
      %p119 = scmp.ne.s32.totalorder %s114, %s116
      %p120 = scmp.eq.s32.totalorder %s17, 0
      %p121 = por %p119, %p120
      %p122 = scmp.ne.s32.totalorder %s114, %s116
      %p123 = scmp.eq.s32.totalorder %s22, 1
      %p124 = por %p122, %p123
      %p125 = scmp.ne.s32.totalorder %s116, %s117
      %p126 = scmp.eq.s32.totalorder %s22, 0
      %p127 = por %p125, %p126
      %p128 = scmp.ne.s32.totalorder %s116, %s117
      %p129 = scmp.eq.s32.totalorder %s23, 1
      %p130 = por %p128, %p129
      %p132 = scmp.ne.s32.totalorder %s117, %s131
      %p133 = scmp.eq.s32.totalorder %s23, 0
      %p134 = por %p132, %p133
      %s135 = ssub.s32 %s17, %s24
      %p136 = scmp.eq.s32.totalorder %s135, 0
      %s138 = sadd.s32 %s137, 1
      %s139 = scalar_select %p136, %s137, %s138
      %p142 = pneg %p136
      %p143 = scmp.eq.s32.totalorder %s17, 1
      %p144 = por %p142, %p143
      %p145 = scmp.ne.s32.totalorder %s137, %s140
      %p146 = scmp.eq.s32.totalorder %s17, 0
      %p147 = por %p145, %p146
      %p148 = scmp.ne.s32.totalorder %s137, %s140
      %p149 = scmp.eq.s32.totalorder %s22, 1
      %p150 = por %p148, %p149
      %p151 = scmp.ne.s32.totalorder %s140, %s141
      %p152 = scmp.eq.s32.totalorder %s22, 0
      %p153 = por %p151, %p152
      %p154 = scmp.ne.s32.totalorder %s140, %s141
      %p155 = scmp.eq.s32.totalorder %s23, 1
      %p156 = por %p154, %p155
      %p158 = scmp.ne.s32.totalorder %s141, %s157
      %p159 = scmp.eq.s32.totalorder %s23, 0
      %p160 = por %p158, %p159
      %p161 = scmp.le.s32.totalorder 1, %s17
      %p162 = scmp.lt.s32.totalorder %s17, 3
      %p163 = pnand %p161, %p162
      %p164 = pneg %p163
      // Predicated region
      $region9: #{tpu_custom_call.1} parent=5 // pred_check
        _
      $region10: #{tpu_custom_call.1} parent=5 // pred_check_branch
        %166 = sbr.rel (%p163) target = $region12
      $region11: #{tpu_custom_call.1} parent=5 // pred_region
        %s167 = ssub.s32 %s17, 1
        // Predicated region
        $region13: #{tpu_custom_call.1} parent=11 // pred_check
          %p168 = pneg %p64
        $region14: #{tpu_custom_call.1} parent=11 // pred_check_branch
          %170 = sbr.rel (%p168) target = $region16
        $region15: #{tpu_custom_call.1} parent=11 // pred_region
          _
        $region16: #{tpu_custom_call.1} parent=11 // pred_fallthru
          _
        // Predicated region
        $region17: #{tpu_custom_call.1} parent=11 // pred_check
          %p171 = pneg %p85
        $region18: #{tpu_custom_call.1} parent=11 // pred_check_branch
          %173 = sbr.rel (%p171) target = $region20
        $region19: #{tpu_custom_call.1} parent=11 // pred_region
          _
        $region20: #{tpu_custom_call.1} parent=11 // pred_fallthru
          _
        // Predicated region
        $region21: #{tpu_custom_call.1} parent=11 // pred_check
          %p174 = pneg %p106
        $region22: #{tpu_custom_call.1} parent=11 // pred_check_branch
          %176 = sbr.rel (%p174) target = $region24
        $region23: #{tpu_custom_call.1} parent=11 // pred_region
          _
        $region24: #{tpu_custom_call.1} parent=11 // pred_fallthru
          _
        // Predicated region
        $region25: #{tpu_custom_call.1} parent=11 // pred_check
          %p177 = pneg %p127
        $region26: #{tpu_custom_call.1} parent=11 // pred_check_branch
          %179 = sbr.rel (%p177) target = $region28
        $region27: #{tpu_custom_call.1} parent=11 // pred_region
          _
        $region28: #{tpu_custom_call.1} parent=11 // pred_fallthru
          _
      $region12: #{tpu_custom_call.1} parent=5 // pred_fallthru
        _
      %p180 = scmp.lt.s32.totalorder %s17, 2
      // Predicated region
      $region29: #{tpu_custom_call.1} parent=5 // pred_check
        %p181 = pneg %p180
      $region30: #{tpu_custom_call.1} parent=5 // pred_check_branch
        %183 = sbr.rel (%p181) target = $region32
      $region31: #{tpu_custom_call.1} parent=5 // pred_region
        // Predicated region
        $region33: #{tpu_custom_call.1} parent=31 // pred_check
          %p184 = pneg %p37
        $region34: #{tpu_custom_call.1} parent=31 // pred_check_branch
          %186 = sbr.rel (%p184) target = $region36
        $region35: #{tpu_custom_call.1} parent=31 // pred_region
          %s187 = sand.u32 %s27, 1
          %s188 = scalar_lea.sflag [#allocation3], %s187
          %s189 = sand.u32 %s27, 1
          %s190 = smul.addr %s189, 64
          %s191 = scalar_lea.vmem [#allocation2], %s190
          %s193 = ssub.s32 1024, 1024
          %194 = vsyncadd %s188, %s193
          %s195 = smul.addr %s17, 8
          %s196 = smul.addr %s195, 128
          %s197 = scalar_lea.hbm %s0, %s196
          %s198 = sshll.u32 %s191, 4
          %s199 = int_to_ptr.vmem [resolvable:$true] %s198
          %204 = dma.hbm_to_vmem [thread:$0]  %s197, 1024, %s199, %s188, 256, 256, 16
        $region36: #{tpu_custom_call.1} parent=31 // pred_fallthru
          _
      $region32: #{tpu_custom_call.1} parent=5 // pred_fallthru
        _
      %p205 = scmp.le.s32.totalorder 1, %s17
      %p206 = scmp.lt.s32.totalorder %s17, 3
      %p207 = pnand %p205, %p206
      %p208 = pneg %p207
      // Predicated region
      $region37: #{tpu_custom_call.1} parent=5 // pred_check
        _
      $region38: #{tpu_custom_call.1} parent=5 // pred_check_branch
        %210 = sbr.rel (%p207) target = $region40
      $region39: #{tpu_custom_call.1} parent=5 // pred_region
        %s211 = ssub.s32 %s17, 1
        %s212 = sand.u32 %s30, 1
        %s213 = scalar_lea.sflag [#allocation3], %s212
        %s214 = sand.u32 %s30, 1
        %s215 = smul.addr %s214, 64
        %s216 = scalar_lea.vmem [#allocation2], %s215
        // Predicated region
        $region41: #{tpu_custom_call.1} parent=39 // pred_check
          %p217 = pneg %p43
        $region42: #{tpu_custom_call.1} parent=39 // pred_check_branch
          %219 = sbr.rel (%p217) target = $region44
        $region43: #{tpu_custom_call.1} parent=39 // pred_region
          %220 = dma.done %s213, 1024
        $region44: #{tpu_custom_call.1} parent=39 // pred_fallthru
          _
        %s221 = sand.u32 %s30, 1
        %s222 = scalar_lea.sflag [#allocation3], %s221
        %s223 = sand.u32 %s30, 1
        %s224 = smul.addr %s223, 64
        %s225 = scalar_lea.vmem [#allocation2], %s224
        %p226 = pneg %p43
        %p227 = pneg %p40
        %p228 = pneg %p64
        %p229 = pneg %p61
        %p230 = pneg %p85
        %p231 = pneg %p82
        %p232 = pneg %p106
        %p233 = pneg %p103
        %p234 = pneg %p127
        %p235 = pneg %p124
        %p236 = pneg %p153
        %p237 = pneg %p150
        %s238 = sand.u32 %s140, 1
        %s239 = scalar_lea.sflag [#allocation4], %s238
        %s240 = sand.u32 %s140, 1
        %s241 = smul.addr %s240, 64
        %s242 = scalar_lea.vmem [#allocation5], %s241
        %v243 = vld [vmem:[%s216] sm:$0xff]
        %v244 = vld [vmem:[%s216 + $0x8] sm:$0xff]
        %v245 = vld [vmem:[%s216 + $0x10] sm:$0xff]
        %v246 = vld [vmem:[%s216 + $0x18] sm:$0xff]
        %v247 = vld [vmem:[%s216 + $0x20] sm:$0xff]
        %v248 = vld [vmem:[%s216 + $0x28] sm:$0xff]
        %v249 = vld [vmem:[%s216 + $0x30] sm:$0xff]
        %v250 = vld [vmem:[%s216 + $0x38] sm:$0xff]
        %v251 = vadd.f32 %v243, %v244
        %252 = vadd.xlane.f32.xlu0 %v251
        %v253 = vpop.xlane.xlu0 %252
        %v254 = vadd.f32 %v245, %v246
        %255 = vadd.xlane.f32.xlu0 %v254
        %v256 = vpop.xlane.xlu0 %255
        %v257 = vadd.f32 %v247, %v248
        %258 = vadd.xlane.f32.xlu0 %v257
        %v259 = vpop.xlane.xlu0 %258
        %v260 = vadd.f32 %v249, %v250
        %261 = vadd.xlane.f32.xlu0 %v260
        %v262 = vpop.xlane.xlu0 %261
        %v263 = vmul.f32 %v253, 0.00390625
        %v264 = vmul.f32 %v256, 0.00390625
        %v265 = vmul.f32 %v259, 0.00390625
        %v266 = vmul.f32 %v262, 0.00390625
        %v267 = vld [vmem:[%s1] sm:$0xff]
        %v268 = vld [vmem:[%s1 + $0x8] sm:$0xff]
        %v269 = vld [vmem:[%s1 + $0x10] sm:$0xff]
        %v270 = vld [vmem:[%s1 + $0x18] sm:$0xff]
        %v271 = vld [vmem:[%s2] sm:$0x1]
        %v276 = vlaneseq
        %v277 = vand.u32 %v276, 127
        %v278 = vlaneseq
        %v279 = vshrl.u32 %v278, 7
        %v280 = vsub.s32 %v277, %v279
        %v281 = vrot.slane %v263, %v280
        %v282 = vadd.s32 %v277, 4294967288
        %v283 = vlaneseq
        %v284 = vshrl.u32 %v283, 7
        %v285 = vsub.s32 %v282, %v284
        %v286 = vrot.slane %v264, %v285
        %vm287 = vcmask 130112
        %v288 = vsel %vm287, %v286, %v281
        %v289 = vadd.s32 %v277, 4294967280
        %v290 = vlaneseq
        %v291 = vshrl.u32 %v290, 7
        %v292 = vsub.s32 %v289, %v291
        %v293 = vrot.slane %v265, %v292
        %vm294 = vcmask 195712
        %v295 = vsel %vm294, %v293, %v288
        %v296 = vadd.s32 %v277, 4294967272
        %v297 = vlaneseq
        %v298 = vshrl.u32 %v297, 7
        %v299 = vsub.s32 %v296, %v298
        %v300 = vrot.slane %v266, %v299
        %vm301 = vcmask 261312
        %v302 = vsel %vm301, %v300, %v295
        %vm303 = vcmask 261120
        %v304 = vsel %vm303, %v302, 0
        %306 = vmatprep.subr.mxu0 0.0
        %307 = vmatpush1.msra.mxu0 %v267
        %308 = vmatprep.subr.mxu0 0.0
        %309 = vmatpush1.msra.mxu0 %v268
        %310 = vmatprep.subr.mxu0 0.0
        %311 = vmatpush1.msra.mxu0 %v269
        %312 = vmatprep.subr.mxu0 0.0
        %313 = vmatpush1.msra.mxu0 %v270
        %314 = vmatprep.subr.mxu0 0.0
        %315 = vmatpush1.msra.mxu0 0.0
        %316 = vmatprep.subr.mxu0 0.0
        %317 = vmatpush1.msra.mxu0 0.0
        %318 = vmatprep.subr.mxu0 0.0
        %319 = vmatpush1.msra.mxu0 0.0
        %320 = vmatprep.subr.mxu0 0.0
        %321 = vmatpush1.msra.mxu0 0.0
        %322 = vmatprep.subr.mxu0 0.0
        %323 = vmatpush1.msra.mxu0 0.0
        %324 = vmatprep.subr.mxu0 0.0
        %325 = vmatpush1.msra.mxu0 0.0
        %326 = vmatprep.subr.mxu0 0.0
        %327 = vmatpush1.msra.mxu0 0.0
        %328 = vmatprep.subr.mxu0 0.0
        %329 = vmatpush1.msra.mxu0 0.0
        %330 = vmatprep.subr.mxu0 0.0
        %331 = vmatpush1.msra.mxu0 0.0
        %332 = vmatprep.subr.mxu0 0.0
        %333 = vmatpush1.msra.mxu0 0.0
        %334 = vmatprep.subr.mxu0 0.0
        %335 = vmatpush1.msra.mxu0 0.0
        %336 = vmatprep.subr.mxu0 0.0
        %337 = vmatpush1.msra.mxu0 0.0
        %338 = vmatprep.subr.mxu0 0.0
        %339 = vmatpush1.msra.mxu0 0.0
        %340 = vmatprep.subr.mxu0 0.0
        %341 = vmatpush1.msra.mxu0 0.0
        %342 = vmatprep.subr.mxu0 0.0
        %343 = vmatpush1.msra.mxu0 0.0
        %344 = vmatprep.subr.mxu0 0.0
        %345 = vmatpush1.msra.mxu0 0.0
        %346 = vmatprep.subr.mxu0 0.0
        %347 = vmatpush1.msra.mxu0 0.0
        %348 = vmatprep.subr.mxu0 0.0
        %349 = vmatpush1.msra.mxu0 0.0
        %350 = vmatprep.subr.mxu0 0.0
        %351 = vmatpush1.msra.mxu0 0.0
        %352 = vmatprep.subr.mxu0 0.0
        %353 = vmatpush1.msra.mxu0 0.0
        %354 = vmatprep.subr.mxu0 0.0
        %355 = vmatpush1.msra.mxu0 0.0
        %356 = vmatprep.subr.mxu0 0.0
        %357 = vmatpush1.msra.mxu0 0.0
        %358 = vmatprep.subr.mxu0 0.0
        %359 = vmatpush1.msra.mxu0 0.0
        %360 = vmatprep.subr.mxu0 0.0
        %361 = vmatpush1.msra.mxu0 0.0
        %362 = vmatprep.subr.mxu0 0.0
        %363 = vmatpush1.msra.mxu0 0.0
        %364 = vmatprep.subr.mxu0 0.0
        %365 = vmatpush1.msra.mxu0 0.0
        %366 = vmatprep.subr.mxu0 0.0
        %367 = vmatpush1.msra.mxu0 0.0
        %368 = vmatprep.subr.mxu0 0.0
        %369 = vmatpush1.msra.mxu0 0.0
        %370 = vmatprep.mubr.f32.mxu0 0.0
        %371 = vmatmul.mubr.f32.gmra.mrb[0].mxu0 %v304
        %v372 = vpop.f32.mrb[0].mxu0
        %v373 = vadd.f32 %v271, %v372
        %v374 = vpop.f32.mrb[0].mxu0
        %375 = vdwg.mxu0
        %v376 = vmul.f32 %v373, 0.5
        %v377 = vrcp.pop 1.4142135
        %v378 = vmul.f32 %v373, %v377
        %v379 = verf.f32.pop %v378
        %v380 = vadd.f32 %v379, 1.0
        %v381 = vmul.f32 %v376, %v380
        %v382 = vld [vmem:[%s3] sm:$0xf]
        %v383 = vld [vmem:[%s4] sm:$0x1]
        %vm384 = vcmask 31744
        %v386 = vsel %vm384, %v381, 0
        %vm388 = vcmask 1043456
        %v390 = vsel %vm388, %v382, 0
        %392 = vmatprep.subr.mxu0 0.0
        %393 = vmatpush1.msra.mxu0 %v390
        %394 = vmatprep.subr.mxu0 0.0
        %395 = vmatpush1.msra.mxu0 0.0
        %396 = vmatprep.subr.mxu0 0.0
        %397 = vmatpush1.msra.mxu0 0.0
        %398 = vmatprep.subr.mxu0 0.0
        %399 = vmatpush1.msra.mxu0 0.0
        %400 = vmatprep.subr.mxu0 0.0
        %401 = vmatpush1.msra.mxu0 0.0
        %402 = vmatprep.subr.mxu0 0.0
        %403 = vmatpush1.msra.mxu0 0.0
        %404 = vmatprep.subr.mxu0 0.0
        %405 = vmatpush1.msra.mxu0 0.0
        %406 = vmatprep.subr.mxu0 0.0
        %407 = vmatpush1.msra.mxu0 0.0
        %408 = vmatprep.subr.mxu0 0.0
        %409 = vmatpush1.msra.mxu0 0.0
        %410 = vmatprep.subr.mxu0 0.0
        %411 = vmatpush1.msra.mxu0 0.0
        %412 = vmatprep.subr.mxu0 0.0
        %413 = vmatpush1.msra.mxu0 0.0
        %414 = vmatprep.subr.mxu0 0.0
        %415 = vmatpush1.msra.mxu0 0.0
        %416 = vmatprep.subr.mxu0 0.0
        %417 = vmatpush1.msra.mxu0 0.0
        %418 = vmatprep.subr.mxu0 0.0
        %419 = vmatpush1.msra.mxu0 0.0
        %420 = vmatprep.subr.mxu0 0.0
        %421 = vmatpush1.msra.mxu0 0.0
        %422 = vmatprep.subr.mxu0 0.0
        %423 = vmatpush1.msra.mxu0 0.0
        %424 = vmatprep.subr.mxu0 0.0
        %425 = vmatpush1.msra.mxu0 0.0
        %426 = vmatprep.subr.mxu0 0.0
        %427 = vmatpush1.msra.mxu0 0.0
        %428 = vmatprep.subr.mxu0 0.0
        %429 = vmatpush1.msra.mxu0 0.0
        %430 = vmatprep.subr.mxu0 0.0
        %431 = vmatpush1.msra.mxu0 0.0
        %432 = vmatprep.subr.mxu0 0.0
        %433 = vmatpush1.msra.mxu0 0.0
        %434 = vmatprep.subr.mxu0 0.0
        %435 = vmatpush1.msra.mxu0 0.0
        %436 = vmatprep.subr.mxu0 0.0
        %437 = vmatpush1.msra.mxu0 0.0
        %438 = vmatprep.subr.mxu0 0.0
        %439 = vmatpush1.msra.mxu0 0.0
        %440 = vmatprep.subr.mxu0 0.0
        %441 = vmatpush1.msra.mxu0 0.0
        %442 = vmatprep.subr.mxu0 0.0
        %443 = vmatpush1.msra.mxu0 0.0
        %444 = vmatprep.subr.mxu0 0.0
        %445 = vmatpush1.msra.mxu0 0.0
        %446 = vmatprep.subr.mxu0 0.0
        %447 = vmatpush1.msra.mxu0 0.0
        %448 = vmatprep.subr.mxu0 0.0
        %449 = vmatpush1.msra.mxu0 0.0
        %450 = vmatprep.subr.mxu0 0.0
        %451 = vmatpush1.msra.mxu0 0.0
        %452 = vmatprep.subr.mxu0 0.0
        %453 = vmatpush1.msra.mxu0 0.0
        %454 = vmatprep.subr.mxu0 0.0
        %455 = vmatpush1.msra.mxu0 0.0
        %456 = vmatprep.mubr.f32.mxu0 0.0
        %457 = vmatmul.mubr.f32.gmra.mrb[0].mxu0 %v386
        %v458 = vpop.f32.mrb[0].mxu0
        %v459 = vadd.f32 %v383, %v458
        %v460 = vpop.f32.mrb[0].mxu0
        %461 = vdwg.mxu0
        %v462 = vxor.u32 %v459, 2147483648
        %v463 = vmul.f32 %v462, 1.442695
        %v464 = vpow.pop %v463
        %v465 = vadd.f32 %v464, 1.0
        %v466 = vrcp.pop %v465
        %v467 = vmul.f32 1.0, %v466
        %v468 = vlaneseq
        %v469 = vshrl.u32 %v468, 7
        %v470 = vsub.s32 0, %v469
        %v471 = vrot.slane %v467, %v470
        %473 = vbcast.lane.b32.xlu0 %v471, 256
        %v474 = vpop.permute.xlu0 %473
        %s476 = sor.u32 256, 8
        %477 = vbcast.lane.b32.xlu0 %v471, %s476
        %v478 = vpop.permute.xlu0 %477
        %s480 = sor.u32 256, 16
        %481 = vbcast.lane.b32.xlu0 %v471, %s480
        %v482 = vpop.permute.xlu0 %481
        %s484 = sor.u32 256, 24
        %485 = vbcast.lane.b32.xlu0 %v471, %s484
        %v486 = vpop.permute.xlu0 %485
        %v487 = vmul.f32 %v243, %v474
        %v488 = vmul.f32 %v244, %v474
        %v489 = vmul.f32 %v245, %v478
        %v490 = vmul.f32 %v246, %v478
        %v491 = vmul.f32 %v247, %v482
        %v492 = vmul.f32 %v248, %v482
        %v493 = vmul.f32 %v249, %v486
        %v494 = vmul.f32 %v250, %v486
        %495 = vst [vmem:[%s242] sm:$0xff] %v487
        %496 = vst [vmem:[%s242 + $0x8] sm:$0xff] %v488
        %497 = vst [vmem:[%s242 + $0x10] sm:$0xff] %v489
        %498 = vst [vmem:[%s242 + $0x18] sm:$0xff] %v490
        %499 = vst [vmem:[%s242 + $0x20] sm:$0xff] %v491
        %500 = vst [vmem:[%s242 + $0x28] sm:$0xff] %v492
        %501 = vst [vmem:[%s242 + $0x30] sm:$0xff] %v493
        %502 = vst [vmem:[%s242 + $0x38] sm:$0xff] %v494
        %s503 = sand.u32 %s140, 1
        %s504 = scalar_lea.sflag [#allocation4], %s503
        %s505 = sand.u32 %s140, 1
        %s506 = smul.addr %s505, 64
        %s507 = scalar_lea.vmem [#allocation5], %s506
        // Predicated region
        $region45: #{tpu_custom_call.1} parent=39 // pred_check
          %p508 = pneg %p150
        $region46: #{tpu_custom_call.1} parent=39 // pred_check_branch
          %510 = sbr.rel (%p508) target = $region48
        $region47: #{tpu_custom_call.1} parent=39 // pred_region
          %s512 = ssub.s32 1024, 1024
          %513 = vsyncadd %s504, %s512
          %s514 = smul.addr %s22, 8
          %s515 = smul.addr %s514, 128
          %s516 = scalar_lea.hbm %s5, %s515
          %s517 = sshll.u32 %s507, 4
          %s518 = int_to_ptr.vmem [resolvable:$true] %s517
          %523 = dma.vmem_to_hbm [thread:$0]  %s518, 1024, %s516, %s504, 256, 256, 16
        $region48: #{tpu_custom_call.1} parent=39 // pred_fallthru
          _
      $region40: #{tpu_custom_call.1} parent=5 // pred_fallthru
        _
      %p524 = scmp.le.s32.totalorder 2, %s17
      // Predicated region
      $region49: #{tpu_custom_call.1} parent=5 // pred_check
        %p525 = pneg %p524
      $region50: #{tpu_custom_call.1} parent=5 // pred_check_branch
        %527 = sbr.rel (%p525) target = $region52
      $region51: #{tpu_custom_call.1} parent=5 // pred_region
        %s528 = ssub.s32 %s17, 2
        // Predicated region
        $region53: #{tpu_custom_call.1} parent=51 // pred_check
          %p529 = pneg %p156
        $region54: #{tpu_custom_call.1} parent=51 // pred_check_branch
          %531 = sbr.rel (%p529) target = $region56
        $region55: #{tpu_custom_call.1} parent=51 // pred_region
          %s532 = sand.u32 %s141, 1
          %s533 = scalar_lea.sflag [#allocation4], %s532
          %s534 = sand.u32 %s141, 1
          %s535 = smul.addr %s534, 64
          %s536 = scalar_lea.vmem [#allocation5], %s535
          %537 = dma.done %s533, 1024
        $region56: #{tpu_custom_call.1} parent=51 // pred_fallthru
          _
      $region52: #{tpu_custom_call.1} parent=5 // pred_fallthru
        _
    $region6: #{tpu_custom_call.1} parent=1 // loop_footer
      %s21 = sadd.s32 1, %s17
    $region7: #{tpu_custom_call.1} parent=1 // loop_footer_branch
      %16 = sbr.rel target = $region3
    $region8: #{tpu_custom_call.1} parent=1 // loop_exit
      _
    %538 = vsyncpa [#allocation3], 1
    %s539 = scalar_lea.sflag [#allocation3], 1
    %540 = vsyncpa %s539, 1
    %541 = vsyncpa [#allocation4], 1
    %s542 = scalar_lea.sflag [#allocation4], 1
    %543 = vsyncpa %s542, 1

</llo_original>
